<compile_context>
chip_gen: v7x
topology: tpu7x:2x2x1
jax: 0.10.0
libtpu: 0.0.40
codegen_flags: <defaults>
</compile_context>

<pallas_src>
import math

import jax
import jax.numpy as jnp
from jax import lax
from jax.experimental import pallas as pl
from jax.experimental.pallas import tpu as pltpu

EMBED_DIM = 64          # config['embedding_dim'] (small for the demo)
NUM_HEADS = 8           # config['num_heads']
HEAD_DIM = EMBED_DIM // NUM_HEADS
SEQ_LEN = 8             # language sequence length
BATCH = 2


def _make_kernel(B, L, D, H):
    """Build the fused forward kernel for static shapes (B, L, D, H)."""
    hd = D // H
    BL = B * L
    scale = 1.0 / math.sqrt(hd)
    inv_sqrt2 = 1.0 / math.sqrt(2.0)
    f32 = jnp.float32

    def kernel(vis_ref, lang_ref, w_ref, aux_ref, out_ref):
        vis = vis_ref[...]                       # (B, D)   raw visual embedding
        lang = lang_ref[...]                     # (BL, D)  batch-flattened language

        # ---- static slab slices (all sublane-aligned, none cross a 128-lane tile)
        w_kv = w_ref[:, 0:2 * D]                 # (D, 2D) fused [Wk' | Wv']
        w_q = w_ref[:, 2 * D:3 * D]              # (D, D)  Wvp@Wq
        w_1a = w_ref[:, 3 * D:4 * D]             # (D, D)  Wo@W1[:D]
        w_1b = w_ref[:, 4 * D:5 * D]             # (D, D)  W1[D:]
        w_2 = w_ref[:, 5 * D:6 * D]              # (D, D)
        mask = w_ref[:, 6 * D:6 * D + H]         # (D, H)  block-diagonal head mask

        b_kv = aux_ref[0:1, 0:2 * D]             # (1, 2D)
        b_q = aux_ref[0:1, 2 * D:3 * D]          # (1, D)
        b_1 = aux_ref[0:1, 3 * D:4 * D]          # (1, D)
        b_2 = aux_ref[0:1, 4 * D:5 * D]          # (1, D)
        mask_t = aux_ref[0:H, 6 * D:7 * D]       # (H, D)

        # ---- folded projections + attention in_proj ---------------------------
        q = jnp.dot(vis, w_q, preferred_element_type=f32) + b_q        # (B, D)
        kv = jnp.dot(lang, w_kv, preferred_element_type=f32) + b_kv    # (BL, 2D) lane-dense
        k = kv[:, 0:D]                                                  # (BL, D)
        v = kv[:, D:2 * D]                                              # (BL, D)

        # ---- per-head attention (query length == 1 per batch element) ---------
        # The (D,H) block-diagonal mask does the per-head reduce / broadcast with
        # plain matmuls, so no explicit head axis / lane relayout is needed.
        k3 = k.reshape(B, L, D)
        v3 = v.reshape(B, L, D)
        prod = k3 * (q * scale)[:, None, :]                             # (B, L, D)
        scores = jnp.dot(prod.reshape(BL, D), mask,
                         preferred_element_type=f32).reshape(B, L, H)   # (B, L, H)
        scores = scores - jnp.max(scores, axis=1, keepdims=True)
        p = jnp.exp(scores)
        denom = jnp.sum(p, axis=1, keepdims=True)                       # (B, 1, H)
        p = p * pl.reciprocal(denom, approx=True)                       # softmax over keys
        p_full = jnp.dot(p.reshape(BL, H), mask_t,
                         preferred_element_type=f32).reshape(B, L, D)   # (B, L, D)
        attended = jnp.sum(p_full * v3, axis=1)                         # (B, D) pre-out_proj

        # ---- integration MLP (out_proj folded into W1a'; concat -> split weights)
        h1 = (jnp.dot(attended, w_1a, preferred_element_type=f32)
              + jnp.dot(vis, w_1b, preferred_element_type=f32)
              + b_1)
        # exact GELU (PyTorch nn.GELU() default, erf-based)
        h1 = 0.5 * h1 * (1.0 + lax.erf(h1 * inv_sqrt2))
        out_ref[...] = jnp.dot(h1, w_2, preferred_element_type=f32) + b_2

    return kernel


def pack_params(p, D=EMBED_DIM, H=NUM_HEADS):
    """Init-time packing: algebraic weight folds + two DMA slabs."""
    hd = D // H
    # Fold projections into attention in_proj (exact rewrite).
    wq_f = p["wvp"] @ p["wq"]
    bq_f = p["bvp"] @ p["wq"] + p["bq"]
    wk_f = p["wlp"] @ p["wk"]
    bk_f = p["blp"] @ p["wk"] + p["bk"]
    wv_f = p["wlp"] @ p["wv"]
    bv_f = p["blp"] @ p["wv"] + p["bv"]
    wkv = jnp.concatenate([wk_f, wv_f], axis=1)          # (D, 2D)
    bkv = jnp.concatenate([bk_f, bv_f], axis=1)          # (1, 2D)
    # Fold out_proj into integration layer-1; split W1 to avoid in-kernel concat.
    w1a = p["w1"][:D, :]                                  # multiplies attended
    w1b = p["w1"][D:, :]                                  # multiplies raw visual
    w1a_f = p["wo"] @ w1a
    b1_f = p["bo"] @ w1a + p["b1"]
    # Constant block-diagonal head masks.
    head_of_dim = jnp.arange(D, dtype=jnp.int32) // hd
    mask = (head_of_dim[:, None] == jnp.arange(H, dtype=jnp.int32)[None, :]
            ).astype(jnp.float32)                         # (D, H)
    mask_t = mask.T                                        # (H, D)

    cols = 8 * D  # padded to a multiple of 128
    w_slab = jnp.zeros((D, cols), jnp.float32)
    w_slab = w_slab.at[:, 0:2 * D].set(wkv)
    w_slab = w_slab.at[:, 2 * D:3 * D].set(wq_f)
    w_slab = w_slab.at[:, 3 * D:4 * D].set(w1a_f)
    w_slab = w_slab.at[:, 4 * D:5 * D].set(w1b)
    w_slab = w_slab.at[:, 5 * D:6 * D].set(p["w2"])
    w_slab = w_slab.at[:, 6 * D:6 * D + H].set(mask)

    rows = max(8, H)
    aux_slab = jnp.zeros((rows, cols), jnp.float32)
    aux_slab = aux_slab.at[0:1, 0:2 * D].set(bkv)
    aux_slab = aux_slab.at[0:1, 2 * D:3 * D].set(bq_f)
    aux_slab = aux_slab.at[0:1, 3 * D:4 * D].set(b1_f)
    aux_slab = aux_slab.at[0:1, 4 * D:5 * D].set(p["b2"])
    aux_slab = aux_slab.at[0:H, 6 * D:7 * D].set(mask_t)
    return w_slab, aux_slab


def integration_forward(visual_embedding, language_embedding, w_slab, aux_slab,
                        num_heads=NUM_HEADS):
    B, D = visual_embedding.shape
    L = language_embedding.shape[1]
    # Batch-flatten language so the kernel does one (B*L, D) @ (D, 2D) matmul.
    lang_flat = language_embedding.reshape(B * L, D)

    kernel = _make_kernel(B, L, D, num_heads)
    vmem = pltpu.MemorySpace.VMEM
    out = pl.pallas_call(
        kernel,
        out_shape=jax.ShapeDtypeStruct((B, D), jnp.float32),
        in_specs=[pl.BlockSpec(memory_space=vmem)] * 4,
        out_specs=pl.BlockSpec(memory_space=vmem),
    )(visual_embedding, lang_flat, w_slab, aux_slab)
    return out


def reference_forward(vis, lang, p):
    """Pure-JAX reference mirroring the PyTorch forward (no folds)."""
    B, D = vis.shape
    L = lang.shape[1]
    H, hd = NUM_HEADS, HEAD_DIM
    vp = vis @ p["wvp"] + p["bvp"]                   # (B, D)
    lp = lang @ p["wlp"] + p["blp"]                  # (B, L, D)
    q = vp @ p["wq"] + p["bq"]
    k = lp @ p["wk"] + p["bk"]
    v = lp @ p["wv"] + p["bv"]
    qh = q.reshape(B, 1, H, hd)
    kh = k.reshape(B, L, H, hd)
    vh = v.reshape(B, L, H, hd)
    s = jnp.einsum("bqhd,bkhd->bhqk", qh, kh) / math.sqrt(hd)
    attn = jax.nn.softmax(s, axis=-1)
    o = jnp.einsum("bhqk,bkhd->bqhd", attn, vh).reshape(B, D)
    o = o @ p["wo"] + p["bo"]
    cat = jnp.concatenate([o, vis], axis=-1)
    h1 = jax.nn.gelu(cat @ p["w1"] + p["b1"], approximate=False)
    return h1 @ p["w2"] + p["b2"]


def init_params(key, D):
    names = ["wvp", "wlp", "wq", "wk", "wv", "wo", "w2"]
    keys = jax.random.split(key, len(names) + 1)
    params = {}
    for n, k in zip(names, keys[:-1]):
        params[n] = (0.05 * jax.random.normal(k, (D, D))).astype(jnp.float32)
    params["w1"] = (0.05 * jax.random.normal(keys[-1], (2 * D, D))).astype(jnp.float32)
    for n in ["bvp", "blp", "bq", "bk", "bv", "bo", "b1", "b2"]:
        params[n] = jnp.full((1, D), 0.01, dtype=jnp.float32)
    return params


if __name__ == "__main__":
    key = jax.random.PRNGKey(0)
    k_vis, k_lang, k_par = jax.random.split(key, 3)

    visual_embedding = jax.random.normal(
        k_vis, (BATCH, EMBED_DIM), dtype=jnp.float32)
    language_embedding = jax.random.normal(
        k_lang, (BATCH, SEQ_LEN, EMBED_DIM), dtype=jnp.float32)
    params = init_params(k_par, EMBED_DIM)

    # Init-time parameter folding / slab packing (done once, not per-forward).
    w_slab, aux_slab = pack_params(params, EMBED_DIM, NUM_HEADS)

    out = integration_forward(visual_embedding, language_embedding,
                              w_slab, aux_slab)
    out = jax.block_until_ready(out)

    ref = reference_forward(visual_embedding, language_embedding, params)
    assert out.shape == (BATCH, EMBED_DIM)
    assert jnp.allclose(out, ref, rtol=2e-2, atol=2e-3), "kernel/reference mismatch"

    print("KERNEL_OK")
</pallas_src>

<mosaic_0001>
module attributes {stable_mosaic.version = 11 : i64} {
  func.func @kernel(%arg0: memref<2x64xf32, #tpu.memory_space<vmem>>, %arg1: memref<16x64xf32, #tpu.memory_space<vmem>>, %arg2: memref<64x512xf32, #tpu.memory_space<vmem>>, %arg3: memref<8x512xf32, #tpu.memory_space<vmem>>, %arg4: memref<2x64xf32, #tpu.memory_space<vmem>>) attributes {dimension_semantics = [], scalar_prefetch = 0 : i64, scratch_operands = 0 : i64, tpu.core_type = #tpu.core_type<tc>} {
    %c0 = arith.constant 0 : index
    %c0_0 = arith.constant 0 : index
    %0 = vector.load %arg0[%c0, %c0_0] : memref<2x64xf32, #tpu.memory_space<vmem>>, vector<2x64xf32>
    %c0_1 = arith.constant 0 : index
    %c0_2 = arith.constant 0 : index
    %1 = vector.load %arg1[%c0_1, %c0_2] : memref<16x64xf32, #tpu.memory_space<vmem>>, vector<16x64xf32>
    %c0_3 = arith.constant 0 : index
    %c0_4 = arith.constant 0 : index
    %2 = vector.load %arg2[%c0_3, %c0_4] : memref<64x512xf32, #tpu.memory_space<vmem>>, vector<64x128xf32>
    %c0_5 = arith.constant 0 : index
    %c128 = arith.constant 128 : index
    %3 = vector.load %arg2[%c0_5, %c128] : memref<64x512xf32, #tpu.memory_space<vmem>>, vector<64x64xf32>
    %c0_6 = arith.constant 0 : index
    %c192 = arith.constant 192 : index
    %4 = vector.load %arg2[%c0_6, %c192] : memref<64x512xf32, #tpu.memory_space<vmem>>, vector<64x64xf32>
    %c0_7 = arith.constant 0 : index
    %c256 = arith.constant 256 : index
    %5 = vector.load %arg2[%c0_7, %c256] : memref<64x512xf32, #tpu.memory_space<vmem>>, vector<64x64xf32>
    %c0_8 = arith.constant 0 : index
    %c320 = arith.constant 320 : index
    %6 = vector.load %arg2[%c0_8, %c320] : memref<64x512xf32, #tpu.memory_space<vmem>>, vector<64x64xf32>
    %c0_9 = arith.constant 0 : index
    %c384 = arith.constant 384 : index
    %7 = vector.load %arg2[%c0_9, %c384] : memref<64x512xf32, #tpu.memory_space<vmem>>, vector<64x8xf32>
    %c0_10 = arith.constant 0 : index
    %c0_11 = arith.constant 0 : index
    %8 = vector.load %arg3[%c0_10, %c0_11] : memref<8x512xf32, #tpu.memory_space<vmem>>, vector<1x128xf32>
    %c0_12 = arith.constant 0 : index
    %c128_13 = arith.constant 128 : index
    %9 = vector.load %arg3[%c0_12, %c128_13] : memref<8x512xf32, #tpu.memory_space<vmem>>, vector<1x64xf32>
    %c0_14 = arith.constant 0 : index
    %c192_15 = arith.constant 192 : index
    %10 = vector.load %arg3[%c0_14, %c192_15] : memref<8x512xf32, #tpu.memory_space<vmem>>, vector<1x64xf32>
    %c0_16 = arith.constant 0 : index
    %c256_17 = arith.constant 256 : index
    %11 = vector.load %arg3[%c0_16, %c256_17] : memref<8x512xf32, #tpu.memory_space<vmem>>, vector<1x64xf32>
    %c0_18 = arith.constant 0 : index
    %c384_19 = arith.constant 384 : index
    %12 = vector.load %arg3[%c0_18, %c384_19] : memref<8x512xf32, #tpu.memory_space<vmem>>, vector<8x64xf32>
    %cst = arith.constant dense<0.000000e+00> : vector<2x64xf32>
    %13 = tpu.matmul %0, %3, %cst {dimension_numbers = #tpu.dot_dimension_numbers<[1], [0], [0], [1], [0, 0, 1, 1], [], []>} : vector<2x64xf32>, vector<64x64xf32>, vector<2x64xf32> -> vector<2x64xf32>
    %14 = vector.broadcast %9 : vector<1x64xf32> to vector<2x64xf32>
    %15 = arith.addf %13, %14 : vector<2x64xf32>
    %cst_20 = arith.constant dense<0.000000e+00> : vector<16x128xf32>
    %16 = tpu.matmul %1, %2, %cst_20 {dimension_numbers = #tpu.dot_dimension_numbers<[1], [0], [0], [1], [0, 0, 1, 1], [], []>} : vector<16x64xf32>, vector<64x128xf32>, vector<16x128xf32> -> vector<16x128xf32>
    %17 = vector.broadcast %8 : vector<1x128xf32> to vector<16x128xf32>
    %18 = arith.addf %16, %17 : vector<16x128xf32>
    %19 = vector.extract_strided_slice %18 {offsets = [0, 0], sizes = [16, 64], strides = [1, 1]} : vector<16x128xf32> to vector<16x64xf32>
    %20 = vector.extract_strided_slice %18 {offsets = [0, 64], sizes = [16, 64], strides = [1, 1]} : vector<16x128xf32> to vector<16x64xf32>
    %21 = vector.shape_cast %19 : vector<16x64xf32> to vector<2x8x64xf32>
    %22 = vector.shape_cast %20 : vector<16x64xf32> to vector<2x8x64xf32>
    %cst_21 = arith.constant 0.353553385 : f32
    %23 = vector.broadcast %cst_21 : f32 to vector<2x64xf32>
    %24 = arith.mulf %15, %23 : vector<2x64xf32>
    %25 = vector.shape_cast %24 : vector<2x64xf32> to vector<2x1x64xf32>
    %26 = vector.broadcast %25 : vector<2x1x64xf32> to vector<2x8x64xf32>
    %27 = arith.mulf %21, %26 : vector<2x8x64xf32>
    %28 = vector.shape_cast %27 : vector<2x8x64xf32> to vector<16x64xf32>
    %cst_22 = arith.constant dense<0.000000e+00> : vector<16x8xf32>
    %29 = tpu.matmul %28, %7, %cst_22 {dimension_numbers = #tpu.dot_dimension_numbers<[1], [0], [0], [1], [0, 0, 1, 1], [], []>} : vector<16x64xf32>, vector<64x8xf32>, vector<16x8xf32> -> vector<16x8xf32>
    %30 = vector.shape_cast %29 : vector<16x8xf32> to vector<2x8x8xf32>
    %cst_23 = arith.constant dense<0xFF800000> : vector<2x8xf32>
    %31 = vector.multi_reduction <maximumf>, %30, %cst_23 [1] : vector<2x8x8xf32> to vector<2x8xf32>
    %32 = vector.shape_cast %31 : vector<2x8xf32> to vector<2x1x8xf32>
    %33 = vector.broadcast %32 : vector<2x1x8xf32> to vector<2x8x8xf32>
    %34 = arith.subf %30, %33 : vector<2x8x8xf32>
    %35 = math.exp %34 : vector<2x8x8xf32>
    %cst_24 = arith.constant dense<0.000000e+00> : vector<2x8xf32>
    %36 = vector.multi_reduction <add>, %35, %cst_24 [1] : vector<2x8x8xf32> to vector<2x8xf32>
    %37 = vector.shape_cast %36 : vector<2x8xf32> to vector<2x1x8xf32>
    %38 = tpu.reciprocal %37 {approx = true} : vector<2x1x8xf32> -> vector<2x1x8xf32>
    %39 = vector.broadcast %38 : vector<2x1x8xf32> to vector<2x8x8xf32>
    %40 = arith.mulf %35, %39 : vector<2x8x8xf32>
    %41 = vector.shape_cast %40 : vector<2x8x8xf32> to vector<16x8xf32>
    %cst_25 = arith.constant dense<0.000000e+00> : vector<16x64xf32>
    %42 = tpu.matmul %41, %12, %cst_25 {dimension_numbers = #tpu.dot_dimension_numbers<[1], [0], [0], [1], [0, 0, 1, 1], [], []>} : vector<16x8xf32>, vector<8x64xf32>, vector<16x64xf32> -> vector<16x64xf32>
    %43 = vector.shape_cast %42 : vector<16x64xf32> to vector<2x8x64xf32>
    %44 = arith.mulf %43, %22 : vector<2x8x64xf32>
    %cst_26 = arith.constant dense<0.000000e+00> : vector<2x64xf32>
    %45 = vector.multi_reduction <add>, %44, %cst_26 [1] : vector<2x8x64xf32> to vector<2x64xf32>
    %cst_27 = arith.constant dense<0.000000e+00> : vector<2x64xf32>
    %46 = tpu.matmul %45, %4, %cst_27 {dimension_numbers = #tpu.dot_dimension_numbers<[1], [0], [0], [1], [0, 0, 1, 1], [], []>} : vector<2x64xf32>, vector<64x64xf32>, vector<2x64xf32> -> vector<2x64xf32>
    %cst_28 = arith.constant dense<0.000000e+00> : vector<2x64xf32>
    %47 = tpu.matmul %0, %5, %cst_28 {dimension_numbers = #tpu.dot_dimension_numbers<[1], [0], [0], [1], [0, 0, 1, 1], [], []>} : vector<2x64xf32>, vector<64x64xf32>, vector<2x64xf32> -> vector<2x64xf32>
    %48 = arith.addf %46, %47 : vector<2x64xf32>
    %49 = vector.broadcast %10 : vector<1x64xf32> to vector<2x64xf32>
    %50 = arith.addf %48, %49 : vector<2x64xf32>
    %cst_29 = arith.constant 5.000000e-01 : f32
    %51 = vector.broadcast %cst_29 : f32 to vector<2x64xf32>
    %52 = arith.mulf %51, %50 : vector<2x64xf32>
    %cst_30 = arith.constant 0.707106769 : f32
    %53 = vector.broadcast %cst_30 : f32 to vector<2x64xf32>
    %54 = arith.mulf %50, %53 : vector<2x64xf32>
    %55 = math.erf %54 : vector<2x64xf32>
    %cst_31 = arith.constant 1.000000e+00 : f32
    %56 = vector.broadcast %cst_31 : f32 to vector<2x64xf32>
    %57 = arith.addf %56, %55 : vector<2x64xf32>
    %58 = arith.mulf %52, %57 : vector<2x64xf32>
    %cst_32 = arith.constant dense<0.000000e+00> : vector<2x64xf32>
    %59 = tpu.matmul %58, %6, %cst_32 {dimension_numbers = #tpu.dot_dimension_numbers<[1], [0], [0], [1], [0, 0, 1, 1], [], []>} : vector<2x64xf32>, vector<64x64xf32>, vector<2x64xf32> -> vector<2x64xf32>
    %60 = vector.broadcast %11 : vector<1x64xf32> to vector<2x64xf32>
    %61 = arith.addf %59, %60 : vector<2x64xf32>
    %c0_33 = arith.constant 0 : index
    %c0_34 = arith.constant 0 : index
    %62 = vector.load %arg4[%c0_33, %c0_34] : memref<2x64xf32, #tpu.memory_space<vmem>>, vector<2x64xf32>
    tpu.vector_store %arg4[%c0_33, %c0_34], %61 {strides = array<i32>} : memref<2x64xf32, #tpu.memory_space<vmem>>, vector<2x64xf32>,
    return
  }
}

</mosaic_0001>

<llo_original>
// kernel: tpu_custom_call.1
$region0: #{tpu_custom_call.1}
  #allocation0 [shape = 'u32[]', space=smem, size = 0x4, offset = 0x4, fixed_abs, tag = 'smem constant byte address 0x4 - core index']
  #allocation1 [shape = 'u32[144,128]{1,0:T(1,128)}', space=vmem, size = 0x12000, scoped, tag = 'internal scratch']
  %s0 = inlined_call_operand.hbm [shape: f32[2,64], index: 0, kind: input, shape index: {}]
  %s1 = inlined_call_operand.hbm [shape: f32[16,64], index: 1, kind: input, shape index: {}]
  %s2 = inlined_call_operand.hbm [shape: f32[64,512], index: 2, kind: input, shape index: {}]
  %s3 = inlined_call_operand.hbm [shape: f32[8,512], index: 3, kind: input, shape index: {}]
  %s4 = inlined_call_operand.hbm [shape: f32[2,64], index: 4, kind: output, shape index: {}]
  %s5 = sld [smem:[#allocation0]]
  $region42: #{tpu_custom_call.1} parent=0
    _
  %s7 = ssub.s32 1, %s5
  %s8 = scalar_select 0, %s7, %s5
  $region1: #{tpu_custom_call.1} parent=0
    #allocation2 [shape = 'u8[1024]{0}', space=vmem, size = 0x400, scoped, tag = 'input window, operand 0, single buffered']
    #allocation3 [shape = 's32[1]{0}', space=sflag, size = 0x4, scoped, tag = 'scoped memory for tpu_custom_call.1']
    #allocation4 [shape = 's32[1]{0}', space=sflag, size = 0x4, scoped, tag = 'scoped memory for tpu_custom_call.1']
    #allocation5 [shape = 'u8[8192]{0}', space=vmem, size = 0x2000, scoped, tag = 'input window, operand 1, single buffered']
    #allocation6 [shape = 's32[1]{0}', space=sflag, size = 0x4, scoped, tag = 'scoped memory for tpu_custom_call.1']
    #allocation7 [shape = 'u8[131072]{0}', space=vmem, size = 0x20000, scoped, tag = 'input window, operand 2, single buffered']
    #allocation8 [shape = 'u8[16384]{0}', space=vmem, size = 0x4000, scoped, tag = 'input window, operand 3, single buffered']
    #allocation9 [shape = 's32[1]{0}', space=sflag, size = 0x4, scoped, tag = 'scoped memory for tpu_custom_call.1']
    #allocation10 [shape = 'u8[1024]{0}', space=vmem, size = 0x400, scoped, tag = 'output window, operand 0, single buffered']
    %9 = vsyncpa [#allocation3], 0
    %10 = vsyncpa [#allocation6], 0
    %11 = vsyncpa [#allocation9], 0
    %12 = vsyncpa [#allocation4], 0
    // Predicated region
    $region2: #{tpu_custom_call.1} parent=1 // pred_check
      _
    $region3: #{tpu_custom_call.1} parent=1 // pred_check_branch
      %14 = sbr.rel (0) target = $region5
    $region4: #{tpu_custom_call.1} parent=1 // pred_region
      %s16 = ssub.s32 32, 32
      %17 = vsyncadd [#allocation3], %s16
      %s19 = sshll.u32 [#allocation2], 4
      %s20 = int_to_ptr.vmem [resolvable:$true] %s19
      %22 = dma.hbm_to_vmem [thread:$0]  %s0, 32, %s20, [#allocation3]
    $region5: #{tpu_custom_call.1} parent=1 // pred_fallthru
      _
    // Predicated region
    $region6: #{tpu_custom_call.1} parent=1 // pred_check
      _
    $region7: #{tpu_custom_call.1} parent=1 // pred_check_branch
      %24 = sbr.rel (0) target = $region9
    $region8: #{tpu_custom_call.1} parent=1 // pred_region
      %s26 = ssub.s32 256, 256
      %27 = vsyncadd [#allocation6], %s26
      %s28 = sshll.u32 [#allocation5], 4
      %s29 = int_to_ptr.vmem [resolvable:$true] %s28
      %34 = dma.hbm_to_vmem [thread:$0]  %s1, 256, %s29, [#allocation6], 128, 128, 8
    $region9: #{tpu_custom_call.1} parent=1 // pred_fallthru
      _
    // Predicated region
    $region10: #{tpu_custom_call.1} parent=1 // pred_check
      _
    $region11: #{tpu_custom_call.1} parent=1 // pred_check_branch
      %36 = sbr.rel (0) target = $region13
    $region12: #{tpu_custom_call.1} parent=1 // pred_region
      %s38 = ssub.s32 4096, 4096
      %39 = vsyncadd [#allocation6], %s38
      %s40 = sshll.u32 [#allocation7], 4
      %s41 = int_to_ptr.vmem [resolvable:$true] %s40
      %46 = dma.hbm_to_vmem [thread:$0]  %s2, 4096, %s41, [#allocation6], 512, 512, 32
    $region13: #{tpu_custom_call.1} parent=1 // pred_fallthru
      _
    // Predicated region
    $region14: #{tpu_custom_call.1} parent=1 // pred_check
      _
    $region15: #{tpu_custom_call.1} parent=1 // pred_check_branch
      %48 = sbr.rel (0) target = $region17
    $region16: #{tpu_custom_call.1} parent=1 // pred_region
      %s50 = ssub.s32 512, 512
      %51 = vsyncadd [#allocation9], %s50
      %s53 = sshll.u32 [#allocation8], 4
      %s54 = int_to_ptr.vmem [resolvable:$true] %s53
      %56 = dma.hbm_to_vmem [thread:$0]  %s3, 512, %s54, [#allocation9]
    $region17: #{tpu_custom_call.1} parent=1 // pred_fallthru
      _
    // Predicated region
    $region18: #{tpu_custom_call.1} parent=1 // pred_check
      _
    $region19: #{tpu_custom_call.1} parent=1 // pred_check_branch
      %58 = sbr.rel (0) target = $region21
    $region20: #{tpu_custom_call.1} parent=1 // pred_region
      %59 = dma.done [#allocation3], 32
    $region21: #{tpu_custom_call.1} parent=1 // pred_fallthru
      _
    // Predicated region
    $region22: #{tpu_custom_call.1} parent=1 // pred_check
      _
    $region23: #{tpu_custom_call.1} parent=1 // pred_check_branch
      %61 = sbr.rel (0) target = $region25
    $region24: #{tpu_custom_call.1} parent=1 // pred_region
      %62 = dma.done [#allocation6], 256
    $region25: #{tpu_custom_call.1} parent=1 // pred_fallthru
      _
    // Predicated region
    $region26: #{tpu_custom_call.1} parent=1 // pred_check
      _
    $region27: #{tpu_custom_call.1} parent=1 // pred_check_branch
      %64 = sbr.rel (0) target = $region29
    $region28: #{tpu_custom_call.1} parent=1 // pred_region
      %65 = dma.done [#allocation6], 4096
    $region29: #{tpu_custom_call.1} parent=1 // pred_fallthru
      _
    // Predicated region
    $region30: #{tpu_custom_call.1} parent=1 // pred_check
      _
    $region31: #{tpu_custom_call.1} parent=1 // pred_check_branch
      %67 = sbr.rel (0) target = $region33
    $region32: #{tpu_custom_call.1} parent=1 // pred_region
      %68 = dma.done [#allocation9], 512
    $region33: #{tpu_custom_call.1} parent=1 // pred_fallthru
      _
    %v69 = vld [vmem:[#allocation2] sm:$0x3]
    %v70 = vld [vmem:[#allocation5] sm:$0xff]
    %v71 = vld [vmem:[#allocation5 + $0x8] sm:$0xff]
    %v72 = vld [vmem:[#allocation7] sm:$0xff]
    %v73 = vld [vmem:[#allocation7 + $0x20] sm:$0xff]
    %v74 = vld [vmem:[#allocation7 + $0x40] sm:$0xff]
    %v75 = vld [vmem:[#allocation7 + $0x60] sm:$0xff]
    %v76 = vld [vmem:[#allocation7 + $0x80] sm:$0xff]
    %v77 = vld [vmem:[#allocation7 + $0xa0] sm:$0xff]
    %v78 = vld [vmem:[#allocation7 + $0xc0] sm:$0xff]
    %v79 = vld [vmem:[#allocation7 + $0xe0] sm:$0xff]
    %v80 = vld [vmem:[#allocation7 + $0x8] sm:$0xff]
    %v81 = vld [vmem:[#allocation7 + $0x28] sm:$0xff]
    %v82 = vld [vmem:[#allocation7 + $0x48] sm:$0xff]
    %v83 = vld [vmem:[#allocation7 + $0x68] sm:$0xff]
    %v84 = vld [vmem:[#allocation7 + $0x88] sm:$0xff]
    %v85 = vld [vmem:[#allocation7 + $0xa8] sm:$0xff]
    %v86 = vld [vmem:[#allocation7 + $0xc8] sm:$0xff]
    %v87 = vld [vmem:[#allocation7 + $0xe8] sm:$0xff]
    %v88 = vld [vmem:[#allocation7 + $0x10] sm:$0xff]
    %v89 = vld [vmem:[#allocation7 + $0x30] sm:$0xff]
    %v90 = vld [vmem:[#allocation7 + $0x50] sm:$0xff]
    %v91 = vld [vmem:[#allocation7 + $0x70] sm:$0xff]
    %v92 = vld [vmem:[#allocation7 + $0x90] sm:$0xff]
    %v93 = vld [vmem:[#allocation7 + $0xb0] sm:$0xff]
    %v94 = vld [vmem:[#allocation7 + $0xd0] sm:$0xff]
    %v95 = vld [vmem:[#allocation7 + $0xf0] sm:$0xff]
    %v96 = vld [vmem:[#allocation7 + $0x18] sm:$0xff]
    %v97 = vld [vmem:[#allocation7 + $0x38] sm:$0xff]
    %v98 = vld [vmem:[#allocation7 + $0x58] sm:$0xff]
    %v99 = vld [vmem:[#allocation7 + $0x78] sm:$0xff]
    %v100 = vld [vmem:[#allocation7 + $0x98] sm:$0xff]
    %v101 = vld [vmem:[#allocation7 + $0xb8] sm:$0xff]
    %v102 = vld [vmem:[#allocation7 + $0xd8] sm:$0xff]
    %v103 = vld [vmem:[#allocation7 + $0xf8] sm:$0xff]
    %v104 = vld [vmem:[#allocation8] ss:$0 sm:$0xff]
    %v105 = vld [vmem:[#allocation8 + $0x8] ss:$0 sm:$0xff]
    %v106 = vld [vmem:[#allocation8 + $0x10] ss:$0 sm:$0xff]
    %v107 = vld [vmem:[#allocation8 + $0x18] sm:$0xff]
    %vm108 = vcmask 523264
    %v110 = vsel %vm108, %v69, 0
    %112 = vmatprep.subr.mxu0 0.0
    %113 = vmatpush1.msra.mxu0 %v80
    %114 = vmatprep.subr.mxu0 0.0
    %115 = vmatpush1.msra.mxu0 %v81
    %116 = vmatprep.subr.mxu0 0.0
    %117 = vmatpush1.msra.mxu0 %v82
    %118 = vmatprep.subr.mxu0 0.0
    %119 = vmatpush1.msra.mxu0 %v83
    %120 = vmatprep.subr.mxu0 0.0
    %121 = vmatpush1.msra.mxu0 %v84
    %122 = vmatprep.subr.mxu0 0.0
    %123 = vmatpush1.msra.mxu0 %v85
    %124 = vmatprep.subr.mxu0 0.0
    %125 = vmatpush1.msra.mxu0 %v86
    %126 = vmatprep.subr.mxu0 0.0
    %127 = vmatpush1.msra.mxu0 %v87
    %128 = vmatprep.subr.mxu0 0.0
    %129 = vmatpush1.msra.mxu0 0.0
    %130 = vmatprep.subr.mxu0 0.0
    %131 = vmatpush1.msra.mxu0 0.0
    %132 = vmatprep.subr.mxu0 0.0
    %133 = vmatpush1.msra.mxu0 0.0
    %134 = vmatprep.subr.mxu0 0.0
    %135 = vmatpush1.msra.mxu0 0.0
    %136 = vmatprep.subr.mxu0 0.0
    %137 = vmatpush1.msra.mxu0 0.0
    %138 = vmatprep.subr.mxu0 0.0
    %139 = vmatpush1.msra.mxu0 0.0
    %140 = vmatprep.subr.mxu0 0.0
    %141 = vmatpush1.msra.mxu0 0.0
    %142 = vmatprep.subr.mxu0 0.0
    %143 = vmatpush1.msra.mxu0 0.0
    %144 = vmatprep.subr.mxu0 0.0
    %145 = vmatpush1.msra.mxu0 0.0
    %146 = vmatprep.subr.mxu0 0.0
    %147 = vmatpush1.msra.mxu0 0.0
    %148 = vmatprep.subr.mxu0 0.0
    %149 = vmatpush1.msra.mxu0 0.0
    %150 = vmatprep.subr.mxu0 0.0
    %151 = vmatpush1.msra.mxu0 0.0
    %152 = vmatprep.subr.mxu0 0.0
    %153 = vmatpush1.msra.mxu0 0.0
    %154 = vmatprep.subr.mxu0 0.0
    %155 = vmatpush1.msra.mxu0 0.0
    %156 = vmatprep.subr.mxu0 0.0
    %157 = vmatpush1.msra.mxu0 0.0
    %158 = vmatprep.subr.mxu0 0.0
    %159 = vmatpush1.msra.mxu0 0.0
    %160 = vmatprep.subr.mxu0 0.0
    %161 = vmatpush1.msra.mxu0 0.0
    %162 = vmatprep.subr.mxu0 0.0
    %163 = vmatpush1.msra.mxu0 0.0
    %164 = vmatprep.subr.mxu0 0.0
    %165 = vmatpush1.msra.mxu0 0.0
    %166 = vmatprep.subr.mxu0 0.0
    %167 = vmatpush1.msra.mxu0 0.0
    %168 = vmatprep.subr.mxu0 0.0
    %169 = vmatpush1.msra.mxu0 0.0
    %170 = vmatprep.subr.mxu0 0.0
    %171 = vmatpush1.msra.mxu0 0.0
    %172 = vmatprep.subr.mxu0 0.0
    %173 = vmatpush1.msra.mxu0 0.0
    %174 = vmatprep.subr.mxu0 0.0
    %175 = vmatpush1.msra.mxu0 0.0
    %176 = vmatprep.mubr.f32.mxu0 0.0
    %177 = vmatmul.mubr.f32.gmra.mrb[0].mxu0 %v110
    %v178 = vpop.f32.mrb[0].mxu0
    %v179 = vadd.f32 %v105, %v178
    %v180 = vpop.f32.mrb[0].mxu0
    %181 = vdwg.mxu0
    %v183 = vsel %vm108, %v70, 0
    %v186 = vsel %vm108, %v71, 0
    %188 = vmatprep.subr.mxu0 0.0
    %189 = vmatpush1.msra.mxu0 %v72
    %190 = vmatprep.subr.mxu0 0.0
    %191 = vmatpush1.msra.mxu0 %v73
    %192 = vmatprep.subr.mxu0 0.0
    %193 = vmatpush1.msra.mxu0 %v74
    %194 = vmatprep.subr.mxu0 0.0
    %195 = vmatpush1.msra.mxu0 %v75
    %196 = vmatprep.subr.mxu0 0.0
    %197 = vmatpush1.msra.mxu0 %v76
    %198 = vmatprep.subr.mxu0 0.0
    %199 = vmatpush1.msra.mxu0 %v77
    %200 = vmatprep.subr.mxu0 0.0
    %201 = vmatpush1.msra.mxu0 %v78
    %202 = vmatprep.subr.mxu0 0.0
    %203 = vmatpush1.msra.mxu0 %v79
    %204 = vmatprep.subr.mxu0 0.0
    %205 = vmatpush1.msra.mxu0 0.0
    %206 = vmatprep.subr.mxu0 0.0
    %207 = vmatpush1.msra.mxu0 0.0
    %208 = vmatprep.subr.mxu0 0.0
    %209 = vmatpush1.msra.mxu0 0.0
    %210 = vmatprep.subr.mxu0 0.0
    %211 = vmatpush1.msra.mxu0 0.0
    %212 = vmatprep.subr.mxu0 0.0
    %213 = vmatpush1.msra.mxu0 0.0
    %214 = vmatprep.subr.mxu0 0.0
    %215 = vmatpush1.msra.mxu0 0.0
    %216 = vmatprep.subr.mxu0 0.0
    %217 = vmatpush1.msra.mxu0 0.0
    %218 = vmatprep.subr.mxu0 0.0
    %219 = vmatpush1.msra.mxu0 0.0
    %220 = vmatprep.subr.mxu0 0.0
    %221 = vmatpush1.msra.mxu0 0.0
    %222 = vmatprep.subr.mxu0 0.0
    %223 = vmatpush1.msra.mxu0 0.0
    %224 = vmatprep.subr.mxu0 0.0
    %225 = vmatpush1.msra.mxu0 0.0
    %226 = vmatprep.subr.mxu0 0.0
    %227 = vmatpush1.msra.mxu0 0.0
    %228 = vmatprep.subr.mxu0 0.0
    %229 = vmatpush1.msra.mxu0 0.0
    %230 = vmatprep.subr.mxu0 0.0
    %231 = vmatpush1.msra.mxu0 0.0
    %232 = vmatprep.subr.mxu0 0.0
    %233 = vmatpush1.msra.mxu0 0.0
    %234 = vmatprep.subr.mxu0 0.0
    %235 = vmatpush1.msra.mxu0 0.0
    %236 = vmatprep.subr.mxu0 0.0
    %237 = vmatpush1.msra.mxu0 0.0
    %238 = vmatprep.subr.mxu0 0.0
    %239 = vmatpush1.msra.mxu0 0.0
    %240 = vmatprep.subr.mxu0 0.0
    %241 = vmatpush1.msra.mxu0 0.0
    %242 = vmatprep.subr.mxu0 0.0
    %243 = vmatpush1.msra.mxu0 0.0
    %244 = vmatprep.subr.mxu0 0.0
    %245 = vmatpush1.msra.mxu0 0.0
    %246 = vmatprep.subr.mxu0 0.0
    %247 = vmatpush1.msra.mxu0 0.0
    %248 = vmatprep.subr.mxu0 0.0
    %249 = vmatpush1.msra.mxu0 0.0
    %250 = vmatprep.subr.mxu0 0.0
    %251 = vmatpush1.msra.mxu0 0.0
    %252 = vmatprep.mubr.f32.mxu0 0.0
    %253 = vmatmul.mubr.f32.gmra.mrb[0].mxu0 %v183
    %v254 = vpop.f32.mrb[0].mxu0
    %v255 = vadd.f32 %v104, %v254
    %v256 = vpop.f32.mrb[0].mxu0
    %257 = vmatprep.mubr.f32.mxu0 0.0
    %258 = vmatmul.mubr.f32.gmra.mrb[0].mxu0 %v186
    %v259 = vpop.f32.mrb[0].mxu0
    %v260 = vadd.f32 %v104, %v259
    %v261 = vpop.f32.mrb[0].mxu0
    %262 = vdwg.mxu0
    %v263 = vmul.f32 %v179, 0.35355338
    %v266 = vunpack.c.l.s4 1966171168
    %v267 = vunpack.c.0.s8 %v266
    %v268 = vlaneseq
    %v269 = vshrl.u32 %v268, 7
    %v270 = vsub.s32 %v267, %v269
    %v271 = vrot.slane %v263, %v270
    %v272 = vcombine.high %v271, %v271
    %v274 = vunpack.c.l.s4 1966171168
    %v275 = vunpack.c.0.s8 %v274
    %v276 = vlaneseq
    %v277 = vshrl.u32 %v276, 7
    %v278 = vsub.s32 %v275, %v277
    %v279 = vrot.slane %v271, %v278
    %v281 = vunpack.c.l.s4 1966171168
    %v282 = vunpack.c.0.s8 %v281
    %v283 = vlaneseq
    %v284 = vshrl.u32 %v283, 7
    %v285 = vsub.s32 %v282, %v284
    %v286 = vrot.slane %v272, %v285
    %v287 = vlaneseq
    %v288 = vshrl.u32 %v287, 7
    %v289 = vsub.s32 0, %v288
    %v290 = vrot.slane %v279, %v289
    %v291 = vlaneseq
    %v292 = vshrl.u32 %v291, 7
    %v293 = vsub.s32 0, %v292
    %v294 = vrot.slane %v286, %v293
    %v297 = vmul.f32 %v255, %v290
    %v298 = vmul.f32 %v260, %v294
    %v300 = vsel %vm108, %v297, 0
    %v303 = vsel %vm108, %v298, 0
    %305 = vmatprep.subr.mxu0 0.0
    %306 = vmatpush1.msra.mxu0 %v96
    %307 = vmatprep.subr.mxu0 0.0
    %308 = vmatpush1.msra.mxu0 %v97
    %309 = vmatprep.subr.mxu0 0.0
    %310 = vmatpush1.msra.mxu0 %v98
    %311 = vmatprep.subr.mxu0 0.0
    %312 = vmatpush1.msra.mxu0 %v99
    %313 = vmatprep.subr.mxu0 0.0
    %314 = vmatpush1.msra.mxu0 %v100
    %315 = vmatprep.subr.mxu0 0.0
    %316 = vmatpush1.msra.mxu0 %v101
    %317 = vmatprep.subr.mxu0 0.0
    %318 = vmatpush1.msra.mxu0 %v102
    %319 = vmatprep.subr.mxu0 0.0
    %320 = vmatpush1.msra.mxu0 %v103
    %321 = vmatprep.subr.mxu0 0.0
    %322 = vmatpush1.msra.mxu0 0.0
    %323 = vmatprep.subr.mxu0 0.0
    %324 = vmatpush1.msra.mxu0 0.0
    %325 = vmatprep.subr.mxu0 0.0
    %326 = vmatpush1.msra.mxu0 0.0
    %327 = vmatprep.subr.mxu0 0.0
    %328 = vmatpush1.msra.mxu0 0.0
    %329 = vmatprep.subr.mxu0 0.0
    %330 = vmatpush1.msra.mxu0 0.0
    %331 = vmatprep.subr.mxu0 0.0
    %332 = vmatpush1.msra.mxu0 0.0
    %333 = vmatprep.subr.mxu0 0.0
    %334 = vmatpush1.msra.mxu0 0.0
    %335 = vmatprep.subr.mxu0 0.0
    %336 = vmatpush1.msra.mxu0 0.0
    %337 = vmatprep.subr.mxu0 0.0
    %338 = vmatpush1.msra.mxu0 0.0
    %339 = vmatprep.subr.mxu0 0.0
    %340 = vmatpush1.msra.mxu0 0.0
    %341 = vmatprep.subr.mxu0 0.0
    %342 = vmatpush1.msra.mxu0 0.0
    %343 = vmatprep.subr.mxu0 0.0
    %344 = vmatpush1.msra.mxu0 0.0
    %345 = vmatprep.subr.mxu0 0.0
    %346 = vmatpush1.msra.mxu0 0.0
    %347 = vmatprep.subr.mxu0 0.0
    %348 = vmatpush1.msra.mxu0 0.0
    %349 = vmatprep.subr.mxu0 0.0
    %350 = vmatpush1.msra.mxu0 0.0
    %351 = vmatprep.subr.mxu0 0.0
    %352 = vmatpush1.msra.mxu0 0.0
    %353 = vmatprep.subr.mxu0 0.0
    %354 = vmatpush1.msra.mxu0 0.0
    %355 = vmatprep.subr.mxu0 0.0
    %356 = vmatpush1.msra.mxu0 0.0
    %357 = vmatprep.subr.mxu0 0.0
    %358 = vmatpush1.msra.mxu0 0.0
    %359 = vmatprep.subr.mxu0 0.0
    %360 = vmatpush1.msra.mxu0 0.0
    %361 = vmatprep.subr.mxu0 0.0
    %362 = vmatpush1.msra.mxu0 0.0
    %363 = vmatprep.subr.mxu0 0.0
    %364 = vmatpush1.msra.mxu0 0.0
    %365 = vmatprep.subr.mxu0 0.0
    %366 = vmatpush1.msra.mxu0 0.0
    %367 = vmatprep.subr.mxu0 0.0
    %368 = vmatpush1.msra.mxu0 0.0
    %369 = vmatprep.mubr.f32.mxu0 0.0
    %370 = vmatmul.mubr.f32.gmra.mrb[0].mxu0 %v300
    %v371 = vpop.f32.mrb[0].mxu0
    %v372 = vadd.f32 0.0, %v371
    %v373 = vpop.f32.mrb[0].mxu0
    %374 = vmatprep.mubr.f32.mxu0 0.0
    %375 = vmatmul.mubr.f32.gmra.mrb[0].mxu0 %v303
    %v376 = vpop.f32.mrb[0].mxu0
    %v377 = vadd.f32 0.0, %v376
    %v378 = vpop.f32.mrb[0].mxu0
    %379 = vdwg.mxu0
    %vm380 = vcmask 64512
    %v381 = vsel %vm380, %v372, -inf
    %v382 = vrot.slane %v381, 4
    %v383 = vmax.f32 %v381, %v382
    %v384 = vrot.slane %v383, 2
    %v385 = vmax.f32 %v383, %v384
    %v386 = vrot.slane %v385, 1
    %v387 = vmax.f32 %v385, %v386
    %v388 = vsel %vm380, %v377, -inf
    %v389 = vrot.slane %v388, 4
    %v390 = vmax.f32 %v388, %v389
    %v391 = vrot.slane %v390, 2
    %v392 = vmax.f32 %v390, %v391
    %v393 = vrot.slane %v392, 1
    %v394 = vmax.f32 %v392, %v393
    %v395 = vsub.f32 %v372, %v387
    %v396 = vsub.f32 %v377, %v394
    %v397 = vmul.f32 %v395, 1.442695
    %v398 = vpow.pop %v397
    %v399 = vmul.f32 %v396, 1.442695
    %v400 = vpow.pop %v399
    %v401 = vsel %vm380, %v398, 0.0
    %v402 = vrot.slane %v401, 4
    %v403 = vadd.f32 %v401, %v402
    %v404 = vrot.slane %v403, 2
    %v405 = vadd.f32 %v403, %v404
    %v406 = vrot.slane %v405, 1
    %v407 = vadd.f32 %v405, %v406
    %v408 = vsel %vm380, %v400, 0.0
    %v409 = vrot.slane %v408, 4
    %v410 = vadd.f32 %v408, %v409
    %v411 = vrot.slane %v410, 2
    %v412 = vadd.f32 %v410, %v411
    %v413 = vrot.slane %v412, 1
    %v414 = vadd.f32 %v412, %v413
    %v415 = vrcp.pop %v407
    %v416 = vrcp.pop %v414
    %v417 = vmul.f32 %v398, %v415
    %v418 = vmul.f32 %v400, %v416
    %v420 = vsel %vm380, %v417, 0
    %v423 = vsel %vm380, %v418, 0
    %425 = vmatprep.subr.mxu0 0.0
    %426 = vmatpush1.msra.mxu0 %v107
    %427 = vmatprep.subr.mxu0 0.0
    %428 = vmatpush1.msra.mxu0 0.0
    %429 = vmatprep.subr.mxu0 0.0
    %430 = vmatpush1.msra.mxu0 0.0
    %431 = vmatprep.subr.mxu0 0.0
    %432 = vmatpush1.msra.mxu0 0.0
    %433 = vmatprep.subr.mxu0 0.0
    %434 = vmatpush1.msra.mxu0 0.0
    %435 = vmatprep.subr.mxu0 0.0
    %436 = vmatpush1.msra.mxu0 0.0
    %437 = vmatprep.subr.mxu0 0.0
    %438 = vmatpush1.msra.mxu0 0.0
    %439 = vmatprep.subr.mxu0 0.0
    %440 = vmatpush1.msra.mxu0 0.0
    %441 = vmatprep.subr.mxu0 0.0
    %442 = vmatpush1.msra.mxu0 0.0
    %443 = vmatprep.subr.mxu0 0.0
    %444 = vmatpush1.msra.mxu0 0.0
    %445 = vmatprep.subr.mxu0 0.0
    %446 = vmatpush1.msra.mxu0 0.0
    %447 = vmatprep.subr.mxu0 0.0
    %448 = vmatpush1.msra.mxu0 0.0
    %449 = vmatprep.subr.mxu0 0.0
    %450 = vmatpush1.msra.mxu0 0.0
    %451 = vmatprep.subr.mxu0 0.0
    %452 = vmatpush1.msra.mxu0 0.0
    %453 = vmatprep.subr.mxu0 0.0
    %454 = vmatpush1.msra.mxu0 0.0
    %455 = vmatprep.subr.mxu0 0.0
    %456 = vmatpush1.msra.mxu0 0.0
    %457 = vmatprep.subr.mxu0 0.0
    %458 = vmatpush1.msra.mxu0 0.0
    %459 = vmatprep.subr.mxu0 0.0
    %460 = vmatpush1.msra.mxu0 0.0
    %461 = vmatprep.subr.mxu0 0.0
    %462 = vmatpush1.msra.mxu0 0.0
    %463 = vmatprep.subr.mxu0 0.0
    %464 = vmatpush1.msra.mxu0 0.0
    %465 = vmatprep.subr.mxu0 0.0
    %466 = vmatpush1.msra.mxu0 0.0
    %467 = vmatprep.subr.mxu0 0.0
    %468 = vmatpush1.msra.mxu0 0.0
    %469 = vmatprep.subr.mxu0 0.0
    %470 = vmatpush1.msra.mxu0 0.0
    %471 = vmatprep.subr.mxu0 0.0
    %472 = vmatpush1.msra.mxu0 0.0
    %473 = vmatprep.subr.mxu0 0.0
    %474 = vmatpush1.msra.mxu0 0.0
    %475 = vmatprep.subr.mxu0 0.0
    %476 = vmatpush1.msra.mxu0 0.0
    %477 = vmatprep.subr.mxu0 0.0
    %478 = vmatpush1.msra.mxu0 0.0
    %479 = vmatprep.subr.mxu0 0.0
    %480 = vmatpush1.msra.mxu0 0.0
    %481 = vmatprep.subr.mxu0 0.0
    %482 = vmatpush1.msra.mxu0 0.0
    %483 = vmatprep.subr.mxu0 0.0
    %484 = vmatpush1.msra.mxu0 0.0
    %485 = vmatprep.subr.mxu0 0.0
    %486 = vmatpush1.msra.mxu0 0.0
    %487 = vmatprep.subr.mxu0 0.0
    %488 = vmatpush1.msra.mxu0 0.0
    %489 = vmatprep.mubr.f32.mxu0 0.0
    %490 = vmatmul.mubr.f32.gmra.mrb[0].mxu0 %v420
    %v491 = vpop.f32.mrb[0].mxu0
    %v492 = vadd.f32 0.0, %v491
    %v493 = vpop.f32.mrb[0].mxu0
    %494 = vmatprep.mubr.f32.mxu0 0.0
    %495 = vmatmul.mubr.f32.gmra.mrb[0].mxu0 %v423
    %v496 = vpop.f32.mrb[0].mxu0
    %v497 = vadd.f32 0.0, %v496
    %v498 = vpop.f32.mrb[0].mxu0
    %499 = vdwg.mxu0
    %502 = vrot.lane.b32.xlu0 %v255, 64
    %v503 = vpop.permute.xlu0 %502
    %504 = vrot.lane.b32.xlu0 %v260, 64
    %v505 = vpop.permute.xlu0 %504
    %v508 = vmul.f32 %v492, %v503
    %v509 = vmul.f32 %v497, %v505
    %v510 = vsel %vm108, %v508, 0.0
    %v511 = vrot.slane %v510, 4
    %v512 = vadd.f32 %v510, %v511
    %v513 = vrot.slane %v512, 2
    %v514 = vadd.f32 %v512, %v513
    %v515 = vrot.slane %v514, 1
    %v516 = vadd.f32 %v514, %v515
    %v517 = vsel %vm108, %v509, 0.0
    %v518 = vrot.slane %v517, 4
    %v519 = vadd.f32 %v517, %v518
    %v520 = vrot.slane %v519, 2
    %v521 = vadd.f32 %v519, %v520
    %v522 = vrot.slane %v521, 1
    %v523 = vadd.f32 %v521, %v522
    %524 = vmatprep.subr.mxu0 0.0
    %525 = vmatpush1.msra.mxu0 %v88
    %526 = vmatprep.subr.mxu0 0.0
    %527 = vmatpush1.msra.mxu0 %v89
    %528 = vmatprep.subr.mxu0 0.0
    %529 = vmatpush1.msra.mxu0 %v90
    %530 = vmatprep.subr.mxu0 0.0
    %531 = vmatpush1.msra.mxu0 %v91
    %532 = vmatprep.subr.mxu0 0.0
    %533 = vmatpush1.msra.mxu0 %v92
    %534 = vmatprep.subr.mxu0 0.0
    %535 = vmatpush1.msra.mxu0 %v93
    %536 = vmatprep.subr.mxu0 0.0
    %537 = vmatpush1.msra.mxu0 %v94
    %538 = vmatprep.subr.mxu0 0.0
    %539 = vmatpush1.msra.mxu0 %v95
    %540 = vmatprep.subr.mxu0 0.0
    %541 = vmatpush1.msra.mxu0 0.0
    %542 = vmatprep.subr.mxu0 0.0
    %543 = vmatpush1.msra.mxu0 0.0
    %544 = vmatprep.subr.mxu0 0.0
    %545 = vmatpush1.msra.mxu0 0.0
    %546 = vmatprep.subr.mxu0 0.0
    %547 = vmatpush1.msra.mxu0 0.0
    %548 = vmatprep.subr.mxu0 0.0
    %549 = vmatpush1.msra.mxu0 0.0
    %550 = vmatprep.subr.mxu0 0.0
    %551 = vmatpush1.msra.mxu0 0.0
    %552 = vmatprep.subr.mxu0 0.0
    %553 = vmatpush1.msra.mxu0 0.0
    %554 = vmatprep.subr.mxu0 0.0
    %555 = vmatpush1.msra.mxu0 0.0
    %556 = vmatprep.subr.mxu0 0.0
    %557 = vmatpush1.msra.mxu0 0.0
    %558 = vmatprep.subr.mxu0 0.0
    %559 = vmatpush1.msra.mxu0 0.0
    %560 = vmatprep.subr.mxu0 0.0
    %561 = vmatpush1.msra.mxu0 0.0
    %562 = vmatprep.subr.mxu0 0.0
    %563 = vmatpush1.msra.mxu0 0.0
    %564 = vmatprep.subr.mxu0 0.0
    %565 = vmatpush1.msra.mxu0 0.0
    %566 = vmatprep.subr.mxu0 0.0
    %567 = vmatpush1.msra.mxu0 0.0
    %568 = vmatprep.subr.mxu0 0.0
    %569 = vmatpush1.msra.mxu0 0.0
    %570 = vmatprep.subr.mxu0 0.0
    %571 = vmatpush1.msra.mxu0 0.0
    %572 = vmatprep.subr.mxu0 0.0
    %573 = vmatpush1.msra.mxu0 0.0
    %574 = vmatprep.subr.mxu0 0.0
    %575 = vmatpush1.msra.mxu0 0.0
    %576 = vmatprep.subr.mxu0 0.0
    %577 = vmatpush1.msra.mxu0 0.0
    %578 = vmatprep.subr.mxu0 0.0
    %579 = vmatpush1.msra.mxu0 0.0
    %580 = vmatprep.subr.mxu0 0.0
    %581 = vmatpush1.msra.mxu0 0.0
    %582 = vmatprep.subr.mxu0 0.0
    %583 = vmatpush1.msra.mxu0 0.0
    %584 = vmatprep.subr.mxu0 0.0
    %585 = vmatpush1.msra.mxu0 0.0
    %586 = vmatprep.subr.mxu0 0.0
    %587 = vmatpush1.msra.mxu0 0.0
    %588 = vmatprep.mubr.f32.mxu0 0.0
    %589 = vmatmul.mubr.f32.gmra.mrb[0].mxu0 %v110
    %v590 = vpop.f32.mrb[0].mxu0
    %v591 = vadd.f32 0.0, %v590
    %v592 = vpop.f32.mrb[0].mxu0
    %593 = vdwg.mxu0
    %vm596 = vcmask 1041409
    %v597 = vsel %vm596, %v523, %v516
    %606 = vrot.lane.b32.xlu0 %v80, 64
    %v607 = vpop.permute.xlu0 %606
    %608 = vrot.lane.b32.xlu0 %v81, 64
    %v609 = vpop.permute.xlu0 %608
    %610 = vrot.lane.b32.xlu0 %v82, 64
    %v611 = vpop.permute.xlu0 %610
    %612 = vrot.lane.b32.xlu0 %v83, 64
    %v613 = vpop.permute.xlu0 %612
    %614 = vrot.lane.b32.xlu0 %v84, 64
    %v615 = vpop.permute.xlu0 %614
    %616 = vrot.lane.b32.xlu0 %v85, 64
    %v617 = vpop.permute.xlu0 %616
    %618 = vrot.lane.b32.xlu0 %v86, 64
    %v619 = vpop.permute.xlu0 %618
    %620 = vrot.lane.b32.xlu0 %v87, 64
    %v621 = vpop.permute.xlu0 %620
    %v630 = vsel %vm108, %v597, 0
    %632 = vmatprep.subr.mxu0 0.0
    %633 = vmatpush1.msra.mxu0 %v607
    %634 = vmatprep.subr.mxu0 0.0
    %635 = vmatpush1.msra.mxu0 %v609
    %636 = vmatprep.subr.mxu0 0.0
    %637 = vmatpush1.msra.mxu0 %v611
    %638 = vmatprep.subr.mxu0 0.0
    %639 = vmatpush1.msra.mxu0 %v613
    %640 = vmatprep.subr.mxu0 0.0
    %641 = vmatpush1.msra.mxu0 %v615
    %642 = vmatprep.subr.mxu0 0.0
    %643 = vmatpush1.msra.mxu0 %v617
    %644 = vmatprep.subr.mxu0 0.0
    %645 = vmatpush1.msra.mxu0 %v619
    %646 = vmatprep.subr.mxu0 0.0
    %647 = vmatpush1.msra.mxu0 %v621
    %648 = vmatprep.subr.mxu0 0.0
    %649 = vmatpush1.msra.mxu0 0.0
    %650 = vmatprep.subr.mxu0 0.0
    %651 = vmatpush1.msra.mxu0 0.0
    %652 = vmatprep.subr.mxu0 0.0
    %653 = vmatpush1.msra.mxu0 0.0
    %654 = vmatprep.subr.mxu0 0.0
    %655 = vmatpush1.msra.mxu0 0.0
    %656 = vmatprep.subr.mxu0 0.0
    %657 = vmatpush1.msra.mxu0 0.0
    %658 = vmatprep.subr.mxu0 0.0
    %659 = vmatpush1.msra.mxu0 0.0
    %660 = vmatprep.subr.mxu0 0.0
    %661 = vmatpush1.msra.mxu0 0.0
    %662 = vmatprep.subr.mxu0 0.0
    %663 = vmatpush1.msra.mxu0 0.0
    %664 = vmatprep.subr.mxu0 0.0
    %665 = vmatpush1.msra.mxu0 0.0
    %666 = vmatprep.subr.mxu0 0.0
    %667 = vmatpush1.msra.mxu0 0.0
    %668 = vmatprep.subr.mxu0 0.0
    %669 = vmatpush1.msra.mxu0 0.0
    %670 = vmatprep.subr.mxu0 0.0
    %671 = vmatpush1.msra.mxu0 0.0
    %672 = vmatprep.subr.mxu0 0.0
    %673 = vmatpush1.msra.mxu0 0.0
    %674 = vmatprep.subr.mxu0 0.0
    %675 = vmatpush1.msra.mxu0 0.0
    %676 = vmatprep.subr.mxu0 0.0
    %677 = vmatpush1.msra.mxu0 0.0
    %678 = vmatprep.subr.mxu0 0.0
    %679 = vmatpush1.msra.mxu0 0.0
    %680 = vmatprep.subr.mxu0 0.0
    %681 = vmatpush1.msra.mxu0 0.0
    %682 = vmatprep.subr.mxu0 0.0
    %683 = vmatpush1.msra.mxu0 0.0
    %684 = vmatprep.subr.mxu0 0.0
    %685 = vmatpush1.msra.mxu0 0.0
    %686 = vmatprep.subr.mxu0 0.0
    %687 = vmatpush1.msra.mxu0 0.0
    %688 = vmatprep.subr.mxu0 0.0
    %689 = vmatpush1.msra.mxu0 0.0
    %690 = vmatprep.subr.mxu0 0.0
    %691 = vmatpush1.msra.mxu0 0.0
    %692 = vmatprep.subr.mxu0 0.0
    %693 = vmatpush1.msra.mxu0 0.0
    %694 = vmatprep.subr.mxu0 0.0
    %695 = vmatpush1.msra.mxu0 0.0
    %696 = vmatprep.mubr.f32.mxu0 0.0
    %697 = vmatmul.mubr.f32.gmra.mrb[0].mxu0 %v630
    %v698 = vpop.f32.mrb[0].mxu0
    %v699 = vadd.f32 %v591, %v698
    %v700 = vpop.f32.mrb[0].mxu0
    %701 = vdwg.mxu0
    %703 = vrot.lane.b32.xlu0 %v105, 64
    %v704 = vpop.permute.xlu0 %703
    %v706 = vadd.f32 %v699, %v704
    %v707 = vmul.f32 %v706, 0.5
    %v708 = vmul.f32 %v706, 0.70710677
    %v709 = verf.f32.pop %v708
    %v710 = vadd.f32 %v709, 1.0
    %v711 = vmul.f32 %v707, %v710
    %720 = vrot.lane.b32.xlu0 %v88, 64
    %v721 = vpop.permute.xlu0 %720
    %722 = vrot.lane.b32.xlu0 %v89, 64
    %v723 = vpop.permute.xlu0 %722
    %724 = vrot.lane.b32.xlu0 %v90, 64
    %v725 = vpop.permute.xlu0 %724
    %726 = vrot.lane.b32.xlu0 %v91, 64
    %v727 = vpop.permute.xlu0 %726
    %728 = vrot.lane.b32.xlu0 %v92, 64
    %v729 = vpop.permute.xlu0 %728
    %730 = vrot.lane.b32.xlu0 %v93, 64
    %v731 = vpop.permute.xlu0 %730
    %732 = vrot.lane.b32.xlu0 %v94, 64
    %v733 = vpop.permute.xlu0 %732
    %734 = vrot.lane.b32.xlu0 %v95, 64
    %v735 = vpop.permute.xlu0 %734
    %v745 = vsel %vm108, %v711, 0
    %747 = vmatprep.subr.mxu0 0.0
    %748 = vmatpush1.msra.mxu0 %v721
    %749 = vmatprep.subr.mxu0 0.0
    %750 = vmatpush1.msra.mxu0 %v723
    %751 = vmatprep.subr.mxu0 0.0
    %752 = vmatpush1.msra.mxu0 %v725
    %753 = vmatprep.subr.mxu0 0.0
    %754 = vmatpush1.msra.mxu0 %v727
    %755 = vmatprep.subr.mxu0 0.0
    %756 = vmatpush1.msra.mxu0 %v729
    %757 = vmatprep.subr.mxu0 0.0
    %758 = vmatpush1.msra.mxu0 %v731
    %759 = vmatprep.subr.mxu0 0.0
    %760 = vmatpush1.msra.mxu0 %v733
    %761 = vmatprep.subr.mxu0 0.0
    %762 = vmatpush1.msra.mxu0 %v735
    %763 = vmatprep.subr.mxu0 0.0
    %764 = vmatpush1.msra.mxu0 0.0
    %765 = vmatprep.subr.mxu0 0.0
    %766 = vmatpush1.msra.mxu0 0.0
    %767 = vmatprep.subr.mxu0 0.0
    %768 = vmatpush1.msra.mxu0 0.0
    %769 = vmatprep.subr.mxu0 0.0
    %770 = vmatpush1.msra.mxu0 0.0
    %771 = vmatprep.subr.mxu0 0.0
    %772 = vmatpush1.msra.mxu0 0.0
    %773 = vmatprep.subr.mxu0 0.0
    %774 = vmatpush1.msra.mxu0 0.0
    %775 = vmatprep.subr.mxu0 0.0
    %776 = vmatpush1.msra.mxu0 0.0
    %777 = vmatprep.subr.mxu0 0.0
    %778 = vmatpush1.msra.mxu0 0.0
    %779 = vmatprep.subr.mxu0 0.0
    %780 = vmatpush1.msra.mxu0 0.0
    %781 = vmatprep.subr.mxu0 0.0
    %782 = vmatpush1.msra.mxu0 0.0
    %783 = vmatprep.subr.mxu0 0.0
    %784 = vmatpush1.msra.mxu0 0.0
    %785 = vmatprep.subr.mxu0 0.0
    %786 = vmatpush1.msra.mxu0 0.0
    %787 = vmatprep.subr.mxu0 0.0
    %788 = vmatpush1.msra.mxu0 0.0
    %789 = vmatprep.subr.mxu0 0.0
    %790 = vmatpush1.msra.mxu0 0.0
    %791 = vmatprep.subr.mxu0 0.0
    %792 = vmatpush1.msra.mxu0 0.0
    %793 = vmatprep.subr.mxu0 0.0
    %794 = vmatpush1.msra.mxu0 0.0
    %795 = vmatprep.subr.mxu0 0.0
    %796 = vmatpush1.msra.mxu0 0.0
    %797 = vmatprep.subr.mxu0 0.0
    %798 = vmatpush1.msra.mxu0 0.0
    %799 = vmatprep.subr.mxu0 0.0
    %800 = vmatpush1.msra.mxu0 0.0
    %801 = vmatprep.subr.mxu0 0.0
    %802 = vmatpush1.msra.mxu0 0.0
    %803 = vmatprep.subr.mxu0 0.0
    %804 = vmatpush1.msra.mxu0 0.0
    %805 = vmatprep.subr.mxu0 0.0
    %806 = vmatpush1.msra.mxu0 0.0
    %807 = vmatprep.subr.mxu0 0.0
    %808 = vmatpush1.msra.mxu0 0.0
    %809 = vmatprep.subr.mxu0 0.0
    %810 = vmatpush1.msra.mxu0 0.0
    %811 = vmatprep.mubr.f32.mxu0 0.0
    %812 = vmatmul.mubr.f32.gmra.mrb[0].mxu0 %v745
    %v813 = vpop.f32.mrb[0].mxu0
    %v814 = vadd.f32 %v106, %v813
    %v815 = vpop.f32.mrb[0].mxu0
    %816 = vdwg.mxu0
    %vm817 = vcmask 517120
    %818 = vst.msk [vmem:[#allocation10] sm:$0x3] %vm817, %v814
    // Predicated region
    $region34: #{tpu_custom_call.1} parent=1 // pred_check
      _
    $region35: #{tpu_custom_call.1} parent=1 // pred_check_branch
      %820 = sbr.rel (0) target = $region37
    $region36: #{tpu_custom_call.1} parent=1 // pred_region
      %s822 = ssub.s32 32, 32
      %823 = vsyncadd [#allocation4], %s822
      %s825 = sshll.u32 [#allocation10], 4
      %s826 = int_to_ptr.vmem [resolvable:$true] %s825
      %828 = dma.vmem_to_hbm [thread:$0]  %s826, 32, %s4, [#allocation4]
    $region37: #{tpu_custom_call.1} parent=1 // pred_fallthru
      _
    // Predicated region
    $region38: #{tpu_custom_call.1} parent=1 // pred_check
      _
    $region39: #{tpu_custom_call.1} parent=1 // pred_check_branch
      %830 = sbr.rel (0) target = $region41
    $region40: #{tpu_custom_call.1} parent=1 // pred_region
      %831 = dma.done [#allocation4], 32
    $region41: #{tpu_custom_call.1} parent=1 // pred_fallthru
      _
    %832 = vsyncpa [#allocation3], 1
    %833 = vsyncpa [#allocation6], 1
    %834 = vsyncpa [#allocation9], 1
    %835 = vsyncpa [#allocation4], 1

</llo_original>
